<compile_context>
chip_gen: v6e
topology: v6e:2x2x1
jax: 0.10.0
libtpu: 0.0.40
codegen_flags: <defaults>
</compile_context>

<pallas_src>
import functools

import jax
import jax.numpy as jnp
import numpy as np
from jax.experimental import pallas as pl
from jax.experimental.pallas import tpu as pltpu


def _rup(x, m):
    return ((x + m - 1) // m) * m


def _pad2(x, rows, cols):
    pr, pc = rows - x.shape[0], cols - x.shape[1]
    if pr == 0 and pc == 0:
        return x
    return jnp.pad(x, ((0, pr), (0, pc)))


def _vmem_limit_bytes():
    """Generation-aware VMEM budget: ~75% of physical, capped at 96 MiB."""
    cap = None
    try:
        cap = getattr(pltpu.get_tpu_info(), "vmem_capacity_bytes", None)
    except Exception:
        cap = None
    if not cap:
        return 48 * 1024 * 1024          # safe on v5e / v6e / v7x
    return int(min(96 * 1024 * 1024, cap * 3 // 4))


# --------------------------------------------------------------------------
# Kernel 1: per-source projection  n_src = relu(h_src @ Wq + bq)
# (the ws ones-column comes for free: Wq pad column `hidden` is zero and
#  bq_pad[hidden] = 1.0, so relu(0 + 1) = 1)
# --------------------------------------------------------------------------
def _q_proj_kernel(h_ref, wq_ref, bq_ref, n_ref):
    p = jnp.dot(h_ref[...], wq_ref[...], preferred_element_type=jnp.float32)
    n_ref[...] = jnp.maximum(p + bq_ref[...], 0.0).astype(n_ref.dtype)


# --------------------------------------------------------------------------
# Kernel 2: tiled message passing + combine (block-sparse over the src axis)
# --------------------------------------------------------------------------
def _msg_combine_kernel(kmap_ref, cnt_ref, adj_ref, nsrc_ref, hdst_ref,
                        wn_ref, wh_ref, bw_ref, out_ref, acc_ref,
                        *, hidden, tk, nsrc_resident):
    i = pl.program_id(0)
    k = pl.program_id(1)

    @pl.when(k == 0)
    def _init():
        acc_ref[...] = jnp.zeros_like(acc_ref)

    # Only non-empty adjacency blocks contribute (trailing grid steps repeat the
    # last non-empty block -> no fresh DMA, and the guard skips their matmul).
    @pl.when(k < cnt_ref[i])
    def _accumulate():
        adj = adj_ref[...].astype(jnp.bfloat16)          # VPU cast hides under DMA
        if nsrc_resident:
            start = pl.multiple_of(kmap_ref[i, k] * tk, 128)
            nsrc = nsrc_ref[pl.ds(start, tk), :]
        else:
            nsrc = nsrc_ref[...]
        # acc[:, :hidden] += A_blk @ n_src_blk ; acc[:, hidden] accumulates ws
        acc_ref[...] += jnp.dot(adj, nsrc, preferred_element_type=jnp.float32)

    @pl.when(k == pl.num_programs(1) - 1)
    def _finalize():
        agg = acc_ref[...]                                  # (TM, H_pad) f32
        ws = jnp.maximum(agg[:, hidden:hidden + 1], 1.0)    # clamp(min=1)
        inv_ws = pl.reciprocal(ws, approx=True)             # EUP, not VALU divide
        n = (agg * inv_ws).astype(jnp.bfloat16)             # bf16 for the MXU
        # W(concat([n/ws, h_dst])) == n @ Wn + h_dst @ Wh  (+ bw)
        z = (jnp.dot(n, wn_ref[...], preferred_element_type=jnp.float32)
             + jnp.dot(hdst_ref[...], wh_ref[...], preferred_element_type=jnp.float32)
             + bw_ref[...])
        z = jnp.maximum(z, 0.0)
        # row-wise L2 normalization with zero-norm guard (rsqrt on the EUP)
        nsq = jnp.sum(z * z, axis=1, keepdims=True)
        inv_norm = jnp.where(nsq == 0.0, 1.0, jax.lax.rsqrt(nsq))
        out_ref[...] = z * inv_norm


# --------------------------------------------------------------------------
# Wrapper
# --------------------------------------------------------------------------
def weighted_sage_conv(h_src, h_dst, adj_w, Wq, bq, Ww, bw, *,
                       tm=512, tk=1024, detect_empty_blocks=True):
    """Forward pass of WeightedSAGEConv.

    h_src : [N_src, D_in]   f32
    h_dst : [N_dst, D_in]   f32
    adj_w : [N_dst, N_src]  f32 dense weighted adjacency
    Wq    : [D_in, H]       (torch Q.weight transposed)
    bq    : [H]
    Ww    : [H + D_in, D_out] (torch W.weight transposed; rows: [n/ws ; h_dst])
    bw    : [D_out]
    returns z : [N_dst, D_out] f32
    """
    n_src, d_in = h_src.shape
    n_dst = h_dst.shape[0]
    hidden = Wq.shape[1]
    d_out = Ww.shape[1]

    # ---- padded / aligned sizes ------------------------------------------
    d_in_p = _rup(d_in, 128)
    h_p = _rup(hidden + 1, 128)      # +1 lane for the ws ones-column
    d_out_p = _rup(d_out, 128)

    # dst tile: multiple of 16 (bf16 sublane packing); keep >=2 blocks when
    # possible so the "parallel" axis can shard across v7x's two TensorCores.
    tm = min(tm, _rup(n_dst, 16))
    if n_dst > 16 and _rup(n_dst, tm) == tm:
        tm = max(16, _rup((n_dst + 1) // 2, 16))
    tk = min(tk, _rup(n_src, 128))   # lane-aligned src tile

    n_dst_p = _rup(n_dst, tm)
    n_src_p = _rup(n_src, tk)
    n_i, n_k = n_dst_p // tm, n_src_p // tk

    vmem_limit = _vmem_limit_bytes()

    # ---- adjacency: avoid the wrapper pad+cast pass when already aligned ---
    # TODO(synk): produce the adjacency pre-padded (ideally bf16) upstream so the
    #             padded path is never taken on large graphs.
    if adj_w.shape == (n_dst_p, n_src_p):
        adj_in = adj_w                              # cast to bf16 per tile in-kernel
    else:
        adj_in = _pad2(adj_w, n_dst_p, n_src_p).astype(jnp.bfloat16)

    h_src_p = _pad2(h_src, n_src_p, d_in_p).astype(jnp.bfloat16)
    h_dst_p = _pad2(h_dst, n_dst_p, d_in_p).astype(jnp.bfloat16)

    Wn, Wh = Ww[:hidden], Ww[hidden:]
    Wq_p = _pad2(Wq, d_in_p, h_p).astype(jnp.bfloat16)
    # bias trick: column `hidden` of Wq_p is zero padding, so bq_pad[hidden]=1
    # makes relu(0 + 1) = 1 -> ws falls out of the A @ n_src matmul for free.
    bq_ext = jnp.zeros((h_p,), jnp.float32).at[:hidden].set(bq).at[hidden].set(1.0)
    bq_p = bq_ext.reshape(1, h_p)
    Wn_p = _pad2(Wn, h_p, d_out_p).astype(jnp.bfloat16)    # zero rows >= hidden
    Wh_p = _pad2(Wh, d_in_p, d_out_p).astype(jnp.bfloat16)
    bw_p = jnp.pad(bw, (0, d_out_p - d_out)).reshape(1, d_out_p).astype(jnp.float32)

    # ---- block-sparsity metadata (scalar-prefetched to SMEM) --------------
    # Per dst tile: ordered list of non-empty k blocks (trailing entries repeat
    # the last valid one so the pipeline re-uses the previous DMA) + a count.
    if detect_empty_blocks and n_k > 1:
        blk_nz = jnp.any(adj_in.reshape(n_i, tm, n_k, tk) != 0, axis=(1, 3))
        counts = blk_nz.sum(axis=1).astype(jnp.int32)
        order = jnp.argsort(jnp.where(blk_nz, 0, 1), axis=1, stable=True)
        kidx = jnp.minimum(jnp.arange(n_k, dtype=jnp.int32)[None, :],
                           jnp.maximum(counts - 1, 0)[:, None])
        kmap = jnp.take_along_axis(order.astype(jnp.int32), kidx, axis=1)
    else:
        counts = jnp.full((n_i,), n_k, jnp.int32)
        kmap = jnp.tile(jnp.arange(n_k, dtype=jnp.int32)[None, :], (n_i, 1))

    # ---- kernel 1: project all source nodes once --------------------------
    ts = tk
    n_src_proj = pl.pallas_call(
        _q_proj_kernel,
        out_shape=jax.ShapeDtypeStruct((n_src_p, h_p), jnp.bfloat16),
        grid_spec=pltpu.PrefetchScalarGridSpec(
            num_scalar_prefetch=0,
            grid=(n_src_p // ts,),
            in_specs=[
                pl.BlockSpec((ts, d_in_p), lambda i: (i, 0)),
                pl.BlockSpec((d_in_p, h_p), lambda i: (0, 0)),
                pl.BlockSpec((1, h_p), lambda i: (0, 0)),
            ],
            out_specs=pl.BlockSpec((ts, h_p), lambda i: (i, 0)),
        ),
        compiler_params=pltpu.CompilerParams(
            dimension_semantics=("parallel",),
            vmem_limit_bytes=vmem_limit),
    )(h_src_p, Wq_p, bq_p)

    # ---- decide whether the whole projected n_src stays resident in VMEM ---
    nsrc_bytes = n_src_p * h_p * 2
    adj_elt = jnp.dtype(adj_in.dtype).itemsize
    fixed_bytes = (2 * tm * tk * adj_elt            # adjacency double buffer
                   + 2 * tm * d_in_p * 2            # h_dst double buffer
                   + 2 * tm * d_out_p * 4           # output double buffer
                   + tm * h_p * 4                   # f32 accumulator scratch
                   + 2 * (h_p + d_in_p) * d_out_p * 2
                   + 2 * d_out_p * 4)
    headroom = 8 * 1024 * 1024
    nsrc_resident = 2 * nsrc_bytes <= max(0, vmem_limit - fixed_bytes - headroom)

    if nsrc_resident:
        # fetched from HBM exactly once; sliced by k inside the kernel
        nsrc_spec = pl.BlockSpec((n_src_p, h_p), lambda i, k, km, ct: (0, 0))
    else:
        nsrc_spec = pl.BlockSpec((tk, h_p), lambda i, k, km, ct: (km[i, k], 0))

    # ---- kernel 2: message passing + combine ------------------------------
    grid = (n_i, n_k)                 # reduction axis (N_src blocks) last
    z_p = pl.pallas_call(
        functools.partial(_msg_combine_kernel, hidden=hidden, tk=tk,
                          nsrc_resident=nsrc_resident),
        out_shape=jax.ShapeDtypeStruct((n_dst_p, d_out_p), jnp.float32),
        grid_spec=pltpu.PrefetchScalarGridSpec(
            num_scalar_prefetch=2,    # kmap, counts
            grid=grid,
            in_specs=[
                pl.BlockSpec((tm, tk), lambda i, k, km, ct: (i, km[i, k])),   # adj
                nsrc_spec,                                                    # n_src
                pl.BlockSpec((tm, d_in_p), lambda i, k, km, ct: (i, 0)),      # h_dst
                pl.BlockSpec((h_p, d_out_p), lambda i, k, km, ct: (0, 0)),    # Wn
                pl.BlockSpec((d_in_p, d_out_p), lambda i, k, km, ct: (0, 0)), # Wh
                pl.BlockSpec((1, d_out_p), lambda i, k, km, ct: (0, 0)),      # bw
            ],
            out_specs=pl.BlockSpec((tm, d_out_p), lambda i, k, km, ct: (i, 0)),
            scratch_shapes=[pltpu.VMEM((tm, h_p), jnp.float32)],
        ),
        compiler_params=pltpu.CompilerParams(
            dimension_semantics=("parallel", "arbitrary"),
            vmem_limit_bytes=vmem_limit),
    )(kmap, counts, adj_in, n_src_proj, h_dst_p, Wn_p, Wh_p, bw_p)

    return z_p[:n_dst, :d_out]


# --------------------------------------------------------------------------
# Reference + test
# --------------------------------------------------------------------------
def _xavier_uniform(key, fan_in, fan_out, gain):
    bound = gain * np.sqrt(6.0 / (fan_in + fan_out))
    return jax.random.uniform(key, (fan_in, fan_out), jnp.float32, -bound, bound)


def _reference(h_src, h_dst, adj_w, Wq, bq, Ww, bw):
    n_src = jax.nn.relu(h_src @ Wq + bq)
    agg = adj_w @ n_src
    ws = jnp.maximum(adj_w.sum(axis=1, keepdims=True), 1.0)
    cat = jnp.concatenate([agg / ws, h_dst], axis=1)
    z = jax.nn.relu(cat @ Ww + bw)
    z_norm = jnp.linalg.norm(z, axis=1, keepdims=True)
    z_norm = jnp.where(z_norm == 0.0, 1.0, z_norm)
    return z / z_norm


def _run_case(key, n_src, n_dst, d_in, hidden, d_out, structured, **kw):
    k1, k2, k3, k4, k5, k6 = jax.random.split(key, 6)
    h_src = jax.random.normal(k1, (n_src, d_in), jnp.float32)
    h_dst = jax.random.normal(k2, (n_dst, d_in), jnp.float32)
    mask = (jax.random.uniform(k3, (n_dst, n_src)) < 0.15).astype(jnp.float32)
    if structured:
        # bipartite-like structure so whole adjacency blocks are empty
        row = jnp.arange(n_dst)[:, None]
        col = jnp.arange(n_src)[None, :]
        grp = jnp.where(row < n_dst // 2, col < n_src // 2, col >= n_src // 2)
        mask = mask * grp.astype(jnp.float32)
    adj_w = mask * jax.random.uniform(k6, (n_dst, n_src), jnp.float32, 0.5, 2.0)

    gain = float(np.sqrt(2.0))  # calculate_gain('relu')
    Wq = _xavier_uniform(k4, d_in, hidden, gain)
    bq = jnp.zeros((hidden,), jnp.float32)
    Ww = _xavier_uniform(k5, hidden + d_in, d_out, gain)
    bw = jnp.zeros((d_out,), jnp.float32)

    z = jax.block_until_ready(
        weighted_sage_conv(h_src, h_dst, adj_w, Wq, bq, Ww, bw, **kw))
    z_ref = _reference(h_src, h_dst, adj_w, Wq, bq, Ww, bw)
    # tolerance accounts for bf16 matmul operands (accumulation is f32)
    np.testing.assert_allclose(np.asarray(z), np.asarray(z_ref),
                               rtol=2e-2, atol=2e-2)


if __name__ == "__main__":
    key = jax.random.PRNGKey(0)
    k_a, k_b = jax.random.split(key)

    # case 1: small, unaligned dims -> exercises padding + single-k-block path
    _run_case(k_a, n_src=384, n_dst=200, d_in=48, hidden=40, d_out=56,
              structured=False)

    # case 2: structured-sparse adjacency with multiple k blocks -> exercises
    # scalar-prefetch block skipping + resident n_src dynamic slicing
    _run_case(k_b, n_src=1000, n_dst=300, d_in=48, hidden=40, d_out=56,
              structured=True, tk=256)

    print("KERNEL_OK")
</pallas_src>

<mosaic_0001>
module attributes {stable_mosaic.version = 11 : i64} {
  func.func @_q_proj_kernel(%arg0: i32, %arg1: memref<384x128xbf16, #tpu.memory_space<vmem>>, %arg2: memref<128x128xbf16, #tpu.memory_space<vmem>>, %arg3: memref<1x128xf32, #tpu.memory_space<vmem>>, %arg4: memref<384x128xbf16, #tpu.memory_space<vmem>>) attributes {dimension_semantics = [#tpu.dimension_semantics<parallel>], iteration_bounds = array<i64: 1>, scalar_prefetch = 0 : i64, scratch_operands = 0 : i64, tpu.core_type = #tpu.core_type<tc>, window_params = [{transform_indices = @transform_0, window_bounds = array<i64: 384, 128>}, {pipeline_mode = #tpu.pipeline_mode<synchronous>, transform_indices = @transform_1, window_bounds = array<i64: 128, 128>}, {pipeline_mode = #tpu.pipeline_mode<synchronous>, transform_indices = @transform_2, window_bounds = array<i64: 1, 128>}, {transform_indices = @transform_3, window_bounds = array<i64: 384, 128>}]} {
    %c0 = arith.constant 0 : index
    %c0_0 = arith.constant 0 : index
    %0 = vector.load %arg1[%c0, %c0_0] : memref<384x128xbf16, #tpu.memory_space<vmem>>, vector<384x128xbf16>
    %c0_1 = arith.constant 0 : index
    %c0_2 = arith.constant 0 : index
    %1 = vector.load %arg2[%c0_1, %c0_2] : memref<128x128xbf16, #tpu.memory_space<vmem>>, vector<128x128xbf16>
    %cst = arith.constant dense<0.000000e+00> : vector<384x128xf32>
    %2 = tpu.matmul %0, %1, %cst {dimension_numbers = #tpu.dot_dimension_numbers<[1], [0], [0], [1], [0, 0, 1, 1], [], []>} : vector<384x128xbf16>, vector<128x128xbf16>, vector<384x128xf32> -> vector<384x128xf32>
    %c0_3 = arith.constant 0 : index
    %c0_4 = arith.constant 0 : index
    %3 = vector.load %arg3[%c0_3, %c0_4] : memref<1x128xf32, #tpu.memory_space<vmem>>, vector<1x128xf32>
    %4 = vector.broadcast %3 : vector<1x128xf32> to vector<384x128xf32>
    %5 = arith.addf %2, %4 : vector<384x128xf32>
    %cst_5 = arith.constant 0.000000e+00 : f32
    %6 = vector.broadcast %cst_5 : f32 to vector<384x128xf32>
    %7 = arith.maximumf %5, %6 : vector<384x128xf32>
    %8 = arith.truncf %7 : vector<384x128xf32> to vector<384x128xbf16>
    %c0_6 = arith.constant 0 : index
    %c0_7 = arith.constant 0 : index
    %9 = vector.load %arg4[%c0_6, %c0_7] : memref<384x128xbf16, #tpu.memory_space<vmem>>, vector<384x128xbf16>
    tpu.vector_store %arg4[%c0_6, %c0_7], %8 {strides = array<i32>} : memref<384x128xbf16, #tpu.memory_space<vmem>>, vector<384x128xbf16>,
    return
  }
  func.func @transform_0(%arg0: i32) -> (i32, i32) {
    %c0_i32 = arith.constant 0 : i32
    %c0_i32_0 = arith.constant 0 : i32
    return %arg0, %c0_i32 : i32, i32
  }
  func.func @transform_1(%arg0: i32) -> (i32, i32) {
    %c0_i32 = arith.constant 0 : i32
    %c0_i32_0 = arith.constant 0 : i32
    %c0_i32_1 = arith.constant 0 : i32
    return %c0_i32, %c0_i32_0 : i32, i32
  }
  func.func @transform_2(%arg0: i32) -> (i32, i32) {
    %c0_i32 = arith.constant 0 : i32
    %c0_i32_0 = arith.constant 0 : i32
    %c0_i32_1 = arith.constant 0 : i32
    return %c0_i32, %c0_i32_0 : i32, i32
  }
  func.func @transform_3(%arg0: i32) -> (i32, i32) {
    %c0_i32 = arith.constant 0 : i32
    %c0_i32_0 = arith.constant 0 : i32
    return %arg0, %c0_i32 : i32, i32
  }
}

</mosaic_0001>

<llo_original>
// kernel: tpu_custom_call.1
$region0: #{tpu_custom_call.1}
  #allocation0 [shape = 'u32[]', space=smem, size = 0x4, offset = 0x4, fixed_abs, tag = 'smem constant byte address 0x4 - core index']
  #allocation1 [shape = 'u32[144,128]{1,0:T(1,128)}', space=vmem, size = 0x12000, scoped, tag = 'internal scratch']
  %s0 = inlined_call_operand.hbm [shape: bf16[384,128], index: 0, kind: input, shape index: {}]
  %s1 = inlined_call_operand.hbm [shape: bf16[128,128], index: 1, kind: input, shape index: {}]
  %s2 = inlined_call_operand.vmem [shape: f32[1,128], index: 2, kind: input, shape index: {}]
  %s3 = inlined_call_operand.hbm [shape: bf16[384,128], index: 3, kind: output, shape index: {}]
  %s4 = sld [smem:[#allocation0]]
  $region30: #{tpu_custom_call.1} parent=0
    _
  %s6 = ssub.s32 1, %s4
  %s7 = scalar_select 0, %s6, %s4
  $region1: #{tpu_custom_call.1} parent=0
    #allocation2 [shape = 'u8[98304]{0}', space=vmem, size = 0x18000, scoped, tag = 'input window, operand 0, single buffered']
    #allocation3 [shape = 's32[1]{0}', space=sflag, size = 0x4, scoped, tag = 'scoped memory for tpu_custom_call.1']
    #allocation4 [shape = 's32[1]{0}', space=sflag, size = 0x4, scoped, tag = 'scoped memory for tpu_custom_call.1']
    #allocation5 [shape = 'u8[32768]{0}', space=vmem, size = 0x8000, scoped, tag = 'input window, operand 1, single buffered']
    #allocation6 [shape = 's32[1]{0}', space=sflag, size = 0x4, scoped, tag = 'scoped memory for tpu_custom_call.1']
    #allocation7 [shape = 'u8[98304]{0}', space=vmem, size = 0x18000, scoped, tag = 'output window, operand 0, single buffered']
    %8 = vsyncpa [#allocation3], 0
    %9 = vsyncpa [#allocation6], 0
    %10 = vsyncpa [#allocation4], 0
    // Predicated region
    $region2: #{tpu_custom_call.1} parent=1 // pred_check
      _
    $region3: #{tpu_custom_call.1} parent=1 // pred_check_branch
      %12 = sbr.rel (0) target = $region5
    $region4: #{tpu_custom_call.1} parent=1 // pred_region
      %s14 = ssub.s32 3072, 3072
      %15 = vsyncadd [#allocation3], %s14
      %s16 = sshll.u32 [#allocation2], 4
      %s17 = int_to_ptr.vmem [resolvable:$true] %s16
      %22 = dma.hbm_to_vmem [thread:$0]  %s0, 3072, %s17, [#allocation3], 64, 64, 4
    $region5: #{tpu_custom_call.1} parent=1 // pred_fallthru
      _
    // Predicated region
    $region6: #{tpu_custom_call.1} parent=1 // pred_check
      _
    $region7: #{tpu_custom_call.1} parent=1 // pred_check_branch
      %24 = sbr.rel (0) target = $region9
    $region8: #{tpu_custom_call.1} parent=1 // pred_region
      %s26 = ssub.s32 1024, 1024
      %27 = vsyncadd [#allocation6], %s26
      %s28 = sshll.u32 [#allocation5], 4
      %s29 = int_to_ptr.vmem [resolvable:$true] %s28
      %34 = dma.hbm_to_vmem [thread:$0]  %s1, 1024, %s29, [#allocation6], 64, 64, 4
    $region9: #{tpu_custom_call.1} parent=1 // pred_fallthru
      _
    // Predicated region
    $region10: #{tpu_custom_call.1} parent=1 // pred_check
      _
    $region11: #{tpu_custom_call.1} parent=1 // pred_check_branch
      %36 = sbr.rel (0) target = $region13
    $region12: #{tpu_custom_call.1} parent=1 // pred_region
      _
    $region13: #{tpu_custom_call.1} parent=1 // pred_fallthru
      _
    // Predicated region
    $region14: #{tpu_custom_call.1} parent=1 // pred_check
      _
    $region15: #{tpu_custom_call.1} parent=1 // pred_check_branch
      %38 = sbr.rel (0) target = $region17
    $region16: #{tpu_custom_call.1} parent=1 // pred_region
      %39 = dma.done [#allocation3], 3072
    $region17: #{tpu_custom_call.1} parent=1 // pred_fallthru
      _
    // Predicated region
    $region18: #{tpu_custom_call.1} parent=1 // pred_check
      _
    $region19: #{tpu_custom_call.1} parent=1 // pred_check_branch
      %41 = sbr.rel (0) target = $region21
    $region20: #{tpu_custom_call.1} parent=1 // pred_region
      %42 = dma.done [#allocation6], 1024
    $region21: #{tpu_custom_call.1} parent=1 // pred_fallthru
      _
    %v44 = vld [vmem:[#allocation2] sm:$0xf]
    %v45 = vld [vmem:[#allocation2 + $0x4] sm:$0xf]
    %v46 = vld [vmem:[#allocation2 + $0x8] sm:$0xf]
    %v47 = vld [vmem:[#allocation2 + $0xc] sm:$0xf]
    %v48 = vld [vmem:[#allocation2 + $0x10] sm:$0xf]
    %v49 = vld [vmem:[#allocation2 + $0x14] sm:$0xf]
    %v50 = vld [vmem:[#allocation2 + $0x18] sm:$0xf]
    %v51 = vld [vmem:[#allocation2 + $0x1c] sm:$0xf]
    %v52 = vld [vmem:[#allocation2 + $0x20] sm:$0xf]
    %v53 = vld [vmem:[#allocation2 + $0x24] sm:$0xf]
    %v54 = vld [vmem:[#allocation2 + $0x28] sm:$0xf]
    %v55 = vld [vmem:[#allocation2 + $0x2c] sm:$0xf]
    %v56 = vld [vmem:[#allocation2 + $0x30] sm:$0xf]
    %v57 = vld [vmem:[#allocation2 + $0x34] sm:$0xf]
    %v58 = vld [vmem:[#allocation2 + $0x38] sm:$0xf]
    %v59 = vld [vmem:[#allocation2 + $0x3c] sm:$0xf]
    %v60 = vld [vmem:[#allocation2 + $0x40] sm:$0xf]
    %v61 = vld [vmem:[#allocation2 + $0x44] sm:$0xf]
    %v62 = vld [vmem:[#allocation2 + $0x48] sm:$0xf]
    %v63 = vld [vmem:[#allocation2 + $0x4c] sm:$0xf]
    %v64 = vld [vmem:[#allocation2 + $0x50] sm:$0xf]
    %v65 = vld [vmem:[#allocation2 + $0x54] sm:$0xf]
    %v66 = vld [vmem:[#allocation2 + $0x58] sm:$0xf]
    %v67 = vld [vmem:[#allocation2 + $0x5c] sm:$0xf]
    %v68 = vld [vmem:[#allocation2 + $0x60] sm:$0xf]
    %v69 = vld [vmem:[#allocation2 + $0x64] sm:$0xf]
    %v70 = vld [vmem:[#allocation2 + $0x68] sm:$0xf]
    %v71 = vld [vmem:[#allocation2 + $0x6c] sm:$0xf]
    %v72 = vld [vmem:[#allocation2 + $0x70] sm:$0xf]
    %v73 = vld [vmem:[#allocation2 + $0x74] sm:$0xf]
    %v74 = vld [vmem:[#allocation2 + $0x78] sm:$0xf]
    %v75 = vld [vmem:[#allocation2 + $0x7c] sm:$0xf]
    %v76 = vld [vmem:[#allocation2 + $0x80] sm:$0xf]
    %v77 = vld [vmem:[#allocation2 + $0x84] sm:$0xf]
    %v78 = vld [vmem:[#allocation2 + $0x88] sm:$0xf]
    %v79 = vld [vmem:[#allocation2 + $0x8c] sm:$0xf]
    %v80 = vld [vmem:[#allocation2 + $0x90] sm:$0xf]
    %v81 = vld [vmem:[#allocation2 + $0x94] sm:$0xf]
    %v82 = vld [vmem:[#allocation2 + $0x98] sm:$0xf]
    %v83 = vld [vmem:[#allocation2 + $0x9c] sm:$0xf]
    %v84 = vld [vmem:[#allocation2 + $0xa0] sm:$0xf]
    %v85 = vld [vmem:[#allocation2 + $0xa4] sm:$0xf]
    %v86 = vld [vmem:[#allocation2 + $0xa8] sm:$0xf]
    %v87 = vld [vmem:[#allocation2 + $0xac] sm:$0xf]
    %v88 = vld [vmem:[#allocation2 + $0xb0] sm:$0xf]
    %v89 = vld [vmem:[#allocation2 + $0xb4] sm:$0xf]
    %v90 = vld [vmem:[#allocation2 + $0xb8] sm:$0xf]
    %v91 = vld [vmem:[#allocation2 + $0xbc] sm:$0xf]
    %v92 = vld [vmem:[#allocation5] sm:$0xf]
    %v93 = vld [vmem:[#allocation5 + $0x4] sm:$0xf]
    %v94 = vld [vmem:[#allocation5 + $0x8] sm:$0xf]
    %v95 = vld [vmem:[#allocation5 + $0xc] sm:$0xf]
    %v96 = vld [vmem:[#allocation5 + $0x10] sm:$0xf]
    %v97 = vld [vmem:[#allocation5 + $0x14] sm:$0xf]
    %v98 = vld [vmem:[#allocation5 + $0x18] sm:$0xf]
    %v99 = vld [vmem:[#allocation5 + $0x1c] sm:$0xf]
    %v100 = vld [vmem:[#allocation5 + $0x20] sm:$0xf]
    %v101 = vld [vmem:[#allocation5 + $0x24] sm:$0xf]
    %v102 = vld [vmem:[#allocation5 + $0x28] sm:$0xf]
    %v103 = vld [vmem:[#allocation5 + $0x2c] sm:$0xf]
    %v104 = vld [vmem:[#allocation5 + $0x30] sm:$0xf]
    %v105 = vld [vmem:[#allocation5 + $0x34] sm:$0xf]
    %v106 = vld [vmem:[#allocation5 + $0x38] sm:$0xf]
    %v107 = vld [vmem:[#allocation5 + $0x3c] sm:$0xf]
    %v108 = vld [vmem:[%s2] sm:$0x1]
    %v110 = vlaneseq
    %v111 = vshrl.u32 %v110, 7
    %v112 = vsub.s32 0, %v111
    %v113 = vrot.slane %v108, %v112
    %v163 = vunpack.c.l.b16 %v44
    %v164 = vunpack.c.l.b16 %v45
    %v165 = vunpack.c.l.b16 %v46
    %v166 = vunpack.c.l.b16 %v47
    %v167 = vunpack.c.l.b16 %v48
    %v168 = vunpack.c.l.b16 %v49
    %v169 = vunpack.c.l.b16 %v50
    %v170 = vunpack.c.l.b16 %v51
    %v171 = vunpack.c.l.b16 %v52
    %v172 = vunpack.c.l.b16 %v53
    %v173 = vunpack.c.l.b16 %v54
    %v174 = vunpack.c.l.b16 %v55
    %v175 = vunpack.c.l.b16 %v56
    %v176 = vunpack.c.l.b16 %v57
    %v177 = vunpack.c.l.b16 %v58
    %v178 = vunpack.c.l.b16 %v59
    %v179 = vunpack.c.l.b16 %v60
    %v180 = vunpack.c.l.b16 %v61
    %v181 = vunpack.c.l.b16 %v62
    %v182 = vunpack.c.l.b16 %v63
    %v183 = vunpack.c.l.b16 %v64
    %v184 = vunpack.c.l.b16 %v65
    %v185 = vunpack.c.l.b16 %v66
    %v186 = vunpack.c.l.b16 %v67
    %v187 = vunpack.c.l.b16 %v68
    %v188 = vunpack.c.l.b16 %v69
    %v189 = vunpack.c.l.b16 %v70
    %v190 = vunpack.c.l.b16 %v71
    %v191 = vunpack.c.l.b16 %v72
    %v192 = vunpack.c.l.b16 %v73
    %v193 = vunpack.c.l.b16 %v74
    %v194 = vunpack.c.l.b16 %v75
    %v195 = vunpack.c.l.b16 %v76
    %v196 = vunpack.c.l.b16 %v77
    %v197 = vunpack.c.l.b16 %v78
    %v198 = vunpack.c.l.b16 %v79
    %v199 = vunpack.c.l.b16 %v80
    %v200 = vunpack.c.l.b16 %v81
    %v201 = vunpack.c.l.b16 %v82
    %v202 = vunpack.c.l.b16 %v83
    %v203 = vunpack.c.l.b16 %v84
    %v204 = vunpack.c.l.b16 %v85
    %v205 = vunpack.c.l.b16 %v86
    %v206 = vunpack.c.l.b16 %v87
    %v207 = vunpack.c.l.b16 %v88
    %v208 = vunpack.c.l.b16 %v89
    %v209 = vunpack.c.l.b16 %v90
    %v210 = vunpack.c.l.b16 %v91
    %v211 = vpack.c.b16 %v164, %v163
    %v212 = vpack.c.b16 %v166, %v165
    %v213 = vpack.c.b16 %v168, %v167
    %v214 = vpack.c.b16 %v170, %v169
    %v215 = vpack.c.b16 %v172, %v171
    %v216 = vpack.c.b16 %v174, %v173
    %v217 = vpack.c.b16 %v176, %v175
    %v218 = vpack.c.b16 %v178, %v177
    %v219 = vpack.c.b16 %v180, %v179
    %v220 = vpack.c.b16 %v182, %v181
    %v221 = vpack.c.b16 %v184, %v183
    %v222 = vpack.c.b16 %v186, %v185
    %v223 = vpack.c.b16 %v188, %v187
    %v224 = vpack.c.b16 %v190, %v189
    %v225 = vpack.c.b16 %v192, %v191
    %v226 = vpack.c.b16 %v194, %v193
    %v227 = vpack.c.b16 %v196, %v195
    %v228 = vpack.c.b16 %v198, %v197
    %v229 = vpack.c.b16 %v200, %v199
    %v230 = vpack.c.b16 %v202, %v201
    %v231 = vpack.c.b16 %v204, %v203
    %v232 = vpack.c.b16 %v206, %v205
    %v233 = vpack.c.b16 %v208, %v207
    %v234 = vpack.c.b16 %v210, %v209
    %v275 = vunpack.c.l.b16 %v92
    %v276 = vunpack.c.l.b16 %v93
    %v277 = vunpack.c.l.b16 %v94
    %v278 = vunpack.c.l.b16 %v95
    %v279 = vunpack.c.l.b16 %v96
    %v280 = vunpack.c.l.b16 %v97
    %v281 = vunpack.c.l.b16 %v98
    %v282 = vunpack.c.l.b16 %v99
    %v283 = vunpack.c.l.b16 %v100
    %v284 = vunpack.c.l.b16 %v101
    %v285 = vunpack.c.l.b16 %v102
    %v286 = vunpack.c.l.b16 %v103
    %v287 = vunpack.c.l.b16 %v104
    %v288 = vunpack.c.l.b16 %v105
    %v289 = vunpack.c.l.b16 %v106
    %v290 = vunpack.c.l.b16 %v107
    %v291 = vpack.c.b16 %v276, %v275
    %v292 = vpack.c.b16 %v278, %v277
    %v293 = vpack.c.b16 %v280, %v279
    %v294 = vpack.c.b16 %v282, %v281
    %v295 = vpack.c.b16 %v284, %v283
    %v296 = vpack.c.b16 %v286, %v285
    %v297 = vpack.c.b16 %v288, %v287
    %v298 = vpack.c.b16 %v290, %v289
    %307 = vmatprep.subr.bf16.mxu0 0
    %308 = vmatpush1.bf16.msra.mxu0 %v298
    %309 = vmatprep.subr.bf16.mxu0 0
    %310 = vmatpush1.bf16.msra.mxu0 %v297
    %311 = vmatprep.subr.bf16.mxu0 0
    %312 = vmatpush1.bf16.msra.mxu0 %v296
    %313 = vmatprep.subr.bf16.mxu0 0
    %314 = vmatpush1.bf16.msra.mxu0 %v295
    %315 = vmatprep.subr.bf16.mxu0 0
    %316 = vmatpush1.bf16.msra.mxu0 %v294
    %317 = vmatprep.subr.bf16.mxu0 0
    %318 = vmatpush1.bf16.msra.mxu0 %v293
    %319 = vmatprep.subr.bf16.mxu0 0
    %320 = vmatpush1.bf16.msra.mxu0 %v292
    %321 = vmatprep.subr.bf16.mxu0 0
    %322 = vmatpush1.bf16.msra.mxu0 %v291
    %323 = vmatprep.subr.bf16.mxu0 0
    %324 = vmatpush2.bf16.msra.mxu0 0
    %325 = vmatprep.subr.bf16.mxu0 0
    %326 = vmatpush2.bf16.msra.mxu0 0
    %327 = vmatprep.subr.bf16.mxu0 0
    %328 = vmatpush2.bf16.msra.mxu0 0
    %329 = vmatprep.subr.bf16.mxu0 0
    %330 = vmatpush2.bf16.msra.mxu0 0
    %331 = vmatprep.subr.bf16.mxu0 0
    %332 = vmatpush2.bf16.msra.mxu0 0
    %333 = vmatprep.subr.bf16.mxu0 0
    %334 = vmatpush2.bf16.msra.mxu0 0
    %335 = vmatprep.subr.bf16.mxu0 0
    %336 = vmatpush2.bf16.msra.mxu0 0
    %337 = vmatprep.subr.bf16.mxu0 0
    %338 = vmatpush2.bf16.msra.mxu0 0
    %339 = vmatprep.mubr.bf16.mxu0 0
    %340 = vmatmul.mubr.bf16.gmra.mxu0 %v211
    %v341 = vpop.f32.mrf.mxu0
    %v342 = vadd.f32 %v113, %v341
    %v343 = vpop.f32.mrf.mxu0
    %v344 = vpop.f32.mrf.mxu0
    %v345 = vadd.f32 %v113, %v344
    %v346 = vpop.f32.mrf.mxu0
    %347 = vmatprep.mubr.bf16.mxu0 0
    %348 = vmatmul.mubr.bf16.gmra.mxu0 %v212
    %v349 = vpop.f32.mrf.mxu0
    %v350 = vadd.f32 %v113, %v349
    %v351 = vpop.f32.mrf.mxu0
    %v352 = vpop.f32.mrf.mxu0
    %v353 = vadd.f32 %v113, %v352
    %v354 = vpop.f32.mrf.mxu0
    %355 = vmatprep.mubr.bf16.mxu0 0
    %356 = vmatmul.mubr.bf16.gmra.mxu0 %v213
    %v357 = vpop.f32.mrf.mxu0
    %v358 = vadd.f32 %v113, %v357
    %v359 = vpop.f32.mrf.mxu0
    %v360 = vpop.f32.mrf.mxu0
    %v361 = vadd.f32 %v113, %v360
    %v362 = vpop.f32.mrf.mxu0
    %363 = vmatprep.mubr.bf16.mxu0 0
    %364 = vmatmul.mubr.bf16.gmra.mxu0 %v214
    %v365 = vpop.f32.mrf.mxu0
    %v366 = vadd.f32 %v113, %v365
    %v367 = vpop.f32.mrf.mxu0
    %v368 = vpop.f32.mrf.mxu0
    %v369 = vadd.f32 %v113, %v368
    %v370 = vpop.f32.mrf.mxu0
    %371 = vmatprep.mubr.bf16.mxu0 0
    %372 = vmatmul.mubr.bf16.gmra.mxu0 %v215
    %v373 = vpop.f32.mrf.mxu0
    %v374 = vadd.f32 %v113, %v373
    %v375 = vpop.f32.mrf.mxu0
    %v376 = vpop.f32.mrf.mxu0
    %v377 = vadd.f32 %v113, %v376
    %v378 = vpop.f32.mrf.mxu0
    %379 = vmatprep.mubr.bf16.mxu0 0
    %380 = vmatmul.mubr.bf16.gmra.mxu0 %v216
    %v381 = vpop.f32.mrf.mxu0
    %v382 = vadd.f32 %v113, %v381
    %v383 = vpop.f32.mrf.mxu0
    %v384 = vpop.f32.mrf.mxu0
    %v385 = vadd.f32 %v113, %v384
    %v386 = vpop.f32.mrf.mxu0
    %387 = vmatprep.mubr.bf16.mxu0 0
    %388 = vmatmul.mubr.bf16.gmra.mxu0 %v217
    %v389 = vpop.f32.mrf.mxu0
    %v390 = vadd.f32 %v113, %v389
    %v391 = vpop.f32.mrf.mxu0
    %v392 = vpop.f32.mrf.mxu0
    %v393 = vadd.f32 %v113, %v392
    %v394 = vpop.f32.mrf.mxu0
    %395 = vmatprep.mubr.bf16.mxu0 0
    %396 = vmatmul.mubr.bf16.gmra.mxu0 %v218
    %v397 = vpop.f32.mrf.mxu0
    %v398 = vadd.f32 %v113, %v397
    %v399 = vpop.f32.mrf.mxu0
    %v400 = vpop.f32.mrf.mxu0
    %v401 = vadd.f32 %v113, %v400
    %v402 = vpop.f32.mrf.mxu0
    %403 = vmatprep.mubr.bf16.mxu0 0
    %404 = vmatmul.mubr.bf16.gmra.mxu0 %v219
    %v405 = vpop.f32.mrf.mxu0
    %v406 = vadd.f32 %v113, %v405
    %v407 = vpop.f32.mrf.mxu0
    %v408 = vpop.f32.mrf.mxu0
    %v409 = vadd.f32 %v113, %v408
    %v410 = vpop.f32.mrf.mxu0
    %411 = vmatprep.mubr.bf16.mxu0 0
    %412 = vmatmul.mubr.bf16.gmra.mxu0 %v220
    %v413 = vpop.f32.mrf.mxu0
    %v414 = vadd.f32 %v113, %v413
    %v415 = vpop.f32.mrf.mxu0
    %v416 = vpop.f32.mrf.mxu0
    %v417 = vadd.f32 %v113, %v416
    %v418 = vpop.f32.mrf.mxu0
    %419 = vmatprep.mubr.bf16.mxu0 0
    %420 = vmatmul.mubr.bf16.gmra.mxu0 %v221
    %v421 = vpop.f32.mrf.mxu0
    %v422 = vadd.f32 %v113, %v421
    %v423 = vpop.f32.mrf.mxu0
    %v424 = vpop.f32.mrf.mxu0
    %v425 = vadd.f32 %v113, %v424
    %v426 = vpop.f32.mrf.mxu0
    %427 = vmatprep.mubr.bf16.mxu0 0
    %428 = vmatmul.mubr.bf16.gmra.mxu0 %v222
    %v429 = vpop.f32.mrf.mxu0
    %v430 = vadd.f32 %v113, %v429
    %v431 = vpop.f32.mrf.mxu0
    %v432 = vpop.f32.mrf.mxu0
    %v433 = vadd.f32 %v113, %v432
    %v434 = vpop.f32.mrf.mxu0
    %435 = vmatprep.mubr.bf16.mxu0 0
    %436 = vmatmul.mubr.bf16.gmra.mxu0 %v223
    %v437 = vpop.f32.mrf.mxu0
    %v438 = vadd.f32 %v113, %v437
    %v439 = vpop.f32.mrf.mxu0
    %v440 = vpop.f32.mrf.mxu0
    %v441 = vadd.f32 %v113, %v440
    %v442 = vpop.f32.mrf.mxu0
    %443 = vmatprep.mubr.bf16.mxu0 0
    %444 = vmatmul.mubr.bf16.gmra.mxu0 %v224
    %v445 = vpop.f32.mrf.mxu0
    %v446 = vadd.f32 %v113, %v445
    %v447 = vpop.f32.mrf.mxu0
    %v448 = vpop.f32.mrf.mxu0
    %v449 = vadd.f32 %v113, %v448
    %v450 = vpop.f32.mrf.mxu0
    %451 = vmatprep.mubr.bf16.mxu0 0
    %452 = vmatmul.mubr.bf16.gmra.mxu0 %v225
    %v453 = vpop.f32.mrf.mxu0
    %v454 = vadd.f32 %v113, %v453
    %v455 = vpop.f32.mrf.mxu0
    %v456 = vpop.f32.mrf.mxu0
    %v457 = vadd.f32 %v113, %v456
    %v458 = vpop.f32.mrf.mxu0
    %459 = vmatprep.mubr.bf16.mxu0 0
    %460 = vmatmul.mubr.bf16.gmra.mxu0 %v226
    %v461 = vpop.f32.mrf.mxu0
    %v462 = vadd.f32 %v113, %v461
    %v463 = vpop.f32.mrf.mxu0
    %v464 = vpop.f32.mrf.mxu0
    %v465 = vadd.f32 %v113, %v464
    %v466 = vpop.f32.mrf.mxu0
    %467 = vmatprep.mubr.bf16.mxu0 0
    %468 = vmatmul.mubr.bf16.gmra.mxu0 %v227
    %v469 = vpop.f32.mrf.mxu0
    %v470 = vadd.f32 %v113, %v469
    %v471 = vpop.f32.mrf.mxu0
    %v472 = vpop.f32.mrf.mxu0
    %v473 = vadd.f32 %v113, %v472
    %v474 = vpop.f32.mrf.mxu0
    %475 = vmatprep.mubr.bf16.mxu0 0
    %476 = vmatmul.mubr.bf16.gmra.mxu0 %v228
    %v477 = vpop.f32.mrf.mxu0
    %v478 = vadd.f32 %v113, %v477
    %v479 = vpop.f32.mrf.mxu0
    %v480 = vpop.f32.mrf.mxu0
    %v481 = vadd.f32 %v113, %v480
    %v482 = vpop.f32.mrf.mxu0
    %483 = vmatprep.mubr.bf16.mxu0 0
    %484 = vmatmul.mubr.bf16.gmra.mxu0 %v229
    %v485 = vpop.f32.mrf.mxu0
    %v486 = vadd.f32 %v113, %v485
    %v487 = vpop.f32.mrf.mxu0
    %v488 = vpop.f32.mrf.mxu0
    %v489 = vadd.f32 %v113, %v488
    %v490 = vpop.f32.mrf.mxu0
    %491 = vmatprep.mubr.bf16.mxu0 0
    %492 = vmatmul.mubr.bf16.gmra.mxu0 %v230
    %v493 = vpop.f32.mrf.mxu0
    %v494 = vadd.f32 %v113, %v493
    %v495 = vpop.f32.mrf.mxu0
    %v496 = vpop.f32.mrf.mxu0
    %v497 = vadd.f32 %v113, %v496
    %v498 = vpop.f32.mrf.mxu0
    %499 = vmatprep.mubr.bf16.mxu0 0
    %500 = vmatmul.mubr.bf16.gmra.mxu0 %v231
    %v501 = vpop.f32.mrf.mxu0
    %v502 = vadd.f32 %v113, %v501
    %v503 = vpop.f32.mrf.mxu0
    %v504 = vpop.f32.mrf.mxu0
    %v505 = vadd.f32 %v113, %v504
    %v506 = vpop.f32.mrf.mxu0
    %507 = vmatprep.mubr.bf16.mxu0 0
    %508 = vmatmul.mubr.bf16.gmra.mxu0 %v232
    %v509 = vpop.f32.mrf.mxu0
    %v510 = vadd.f32 %v113, %v509
    %v511 = vpop.f32.mrf.mxu0
    %v512 = vpop.f32.mrf.mxu0
    %v513 = vadd.f32 %v113, %v512
    %v514 = vpop.f32.mrf.mxu0
    %515 = vmatprep.mubr.bf16.mxu0 0
    %516 = vmatmul.mubr.bf16.gmra.mxu0 %v233
    %v517 = vpop.f32.mrf.mxu0
    %v518 = vadd.f32 %v113, %v517
    %v519 = vpop.f32.mrf.mxu0
    %v520 = vpop.f32.mrf.mxu0
    %v521 = vadd.f32 %v113, %v520
    %v522 = vpop.f32.mrf.mxu0
    %523 = vmatprep.mubr.bf16.mxu0 0
    %524 = vmatmul.mubr.bf16.gmra.mxu0 %v234
    %v525 = vpop.f32.mrf.mxu0
    %v526 = vadd.f32 %v113, %v525
    %v527 = vpop.f32.mrf.mxu0
    %v528 = vpop.f32.mrf.mxu0
    %v529 = vadd.f32 %v113, %v528
    %v530 = vpop.f32.mrf.mxu0
    %531 = vdwg.mxu0
    %v532 = vmax.f32 %v342, 0.0
    %v533 = vmax.f32 %v345, 0.0
    %v534 = vmax.f32 %v350, 0.0
    %v535 = vmax.f32 %v353, 0.0
    %v536 = vmax.f32 %v358, 0.0
    %v537 = vmax.f32 %v361, 0.0
    %v538 = vmax.f32 %v366, 0.0
    %v539 = vmax.f32 %v369, 0.0
    %v540 = vmax.f32 %v374, 0.0
    %v541 = vmax.f32 %v377, 0.0
    %v542 = vmax.f32 %v382, 0.0
    %v543 = vmax.f32 %v385, 0.0
    %v544 = vmax.f32 %v390, 0.0
    %v545 = vmax.f32 %v393, 0.0
    %v546 = vmax.f32 %v398, 0.0
    %v547 = vmax.f32 %v401, 0.0
    %v548 = vmax.f32 %v406, 0.0
    %v549 = vmax.f32 %v409, 0.0
    %v550 = vmax.f32 %v414, 0.0
    %v551 = vmax.f32 %v417, 0.0
    %v552 = vmax.f32 %v422, 0.0
    %v553 = vmax.f32 %v425, 0.0
    %v554 = vmax.f32 %v430, 0.0
    %v555 = vmax.f32 %v433, 0.0
    %v556 = vmax.f32 %v438, 0.0
    %v557 = vmax.f32 %v441, 0.0
    %v558 = vmax.f32 %v446, 0.0
    %v559 = vmax.f32 %v449, 0.0
    %v560 = vmax.f32 %v454, 0.0
    %v561 = vmax.f32 %v457, 0.0
    %v562 = vmax.f32 %v462, 0.0
    %v563 = vmax.f32 %v465, 0.0
    %v564 = vmax.f32 %v470, 0.0
    %v565 = vmax.f32 %v473, 0.0
    %v566 = vmax.f32 %v478, 0.0
    %v567 = vmax.f32 %v481, 0.0
    %v568 = vmax.f32 %v486, 0.0
    %v569 = vmax.f32 %v489, 0.0
    %v570 = vmax.f32 %v494, 0.0
    %v571 = vmax.f32 %v497, 0.0
    %v572 = vmax.f32 %v502, 0.0
    %v573 = vmax.f32 %v505, 0.0
    %v574 = vmax.f32 %v510, 0.0
    %v575 = vmax.f32 %v513, 0.0
    %v576 = vmax.f32 %v518, 0.0
    %v577 = vmax.f32 %v521, 0.0
    %v578 = vmax.f32 %v526, 0.0
    %v579 = vmax.f32 %v529, 0.0
    %v580 = vpack.c.bf16 %v533, %v532
    %v581 = vpack.c.bf16 %v535, %v534
    %v582 = vpack.c.bf16 %v537, %v536
    %v583 = vpack.c.bf16 %v539, %v538
    %v584 = vpack.c.bf16 %v541, %v540
    %v585 = vpack.c.bf16 %v543, %v542
    %v586 = vpack.c.bf16 %v545, %v544
    %v587 = vpack.c.bf16 %v547, %v546
    %v588 = vpack.c.bf16 %v549, %v548
    %v589 = vpack.c.bf16 %v551, %v550
    %v590 = vpack.c.bf16 %v553, %v552
    %v591 = vpack.c.bf16 %v555, %v554
    %v592 = vpack.c.bf16 %v557, %v556
    %v593 = vpack.c.bf16 %v559, %v558
    %v594 = vpack.c.bf16 %v561, %v560
    %v595 = vpack.c.bf16 %v563, %v562
    %v596 = vpack.c.bf16 %v565, %v564
    %v597 = vpack.c.bf16 %v567, %v566
    %v598 = vpack.c.bf16 %v569, %v568
    %v599 = vpack.c.bf16 %v571, %v570
    %v600 = vpack.c.bf16 %v573, %v572
    %v601 = vpack.c.bf16 %v575, %v574
    %v602 = vpack.c.bf16 %v577, %v576
    %v603 = vpack.c.bf16 %v579, %v578
    %v628 = vunpack.c.l.b16 %v580
    %v629 = vunpack.c.h.b16 %v580
    %v630 = vunpack.c.l.b16 %v581
    %v631 = vunpack.c.h.b16 %v581
    %v632 = vunpack.c.l.b16 %v582
    %v633 = vunpack.c.h.b16 %v582
    %v634 = vunpack.c.l.b16 %v583
    %v635 = vunpack.c.h.b16 %v583
    %v636 = vunpack.c.l.b16 %v584
    %v637 = vunpack.c.h.b16 %v584
    %v638 = vunpack.c.l.b16 %v585
    %v639 = vunpack.c.h.b16 %v585
    %v640 = vunpack.c.l.b16 %v586
    %v641 = vunpack.c.h.b16 %v586
    %v642 = vunpack.c.l.b16 %v587
    %v643 = vunpack.c.h.b16 %v587
    %v644 = vunpack.c.l.b16 %v588
    %v645 = vunpack.c.h.b16 %v588
    %v646 = vunpack.c.l.b16 %v589
    %v647 = vunpack.c.h.b16 %v589
    %v648 = vunpack.c.l.b16 %v590
    %v649 = vunpack.c.h.b16 %v590
    %v650 = vunpack.c.l.b16 %v591
    %v651 = vunpack.c.h.b16 %v591
    %v652 = vunpack.c.l.b16 %v592
    %v653 = vunpack.c.h.b16 %v592
    %v654 = vunpack.c.l.b16 %v593
    %v655 = vunpack.c.h.b16 %v593
    %v656 = vunpack.c.l.b16 %v594
    %v657 = vunpack.c.h.b16 %v594
    %v658 = vunpack.c.l.b16 %v595
    %v659 = vunpack.c.h.b16 %v595
    %v660 = vunpack.c.l.b16 %v596
    %v661 = vunpack.c.h.b16 %v596
    %v662 = vunpack.c.l.b16 %v597
    %v663 = vunpack.c.h.b16 %v597
    %v664 = vunpack.c.l.b16 %v598
    %v665 = vunpack.c.h.b16 %v598
    %v666 = vunpack.c.l.b16 %v599
    %v667 = vunpack.c.h.b16 %v599
    %v668 = vunpack.c.l.b16 %v600
    %v669 = vunpack.c.h.b16 %v600
    %v670 = vunpack.c.l.b16 %v601
    %v671 = vunpack.c.h.b16 %v601
    %v672 = vunpack.c.l.b16 %v602
    %v673 = vunpack.c.h.b16 %v602
    %v674 = vunpack.c.l.b16 %v603
    %v675 = vunpack.c.h.b16 %v603
    %v676 = vpack.c.b16 %v628, %v628
    %v677 = vpack.c.b16 %v629, %v629
    %v678 = vpack.c.b16 %v630, %v630
    %v679 = vpack.c.b16 %v631, %v631
    %v680 = vpack.c.b16 %v632, %v632
    %v681 = vpack.c.b16 %v633, %v633
    %v682 = vpack.c.b16 %v634, %v634
    %v683 = vpack.c.b16 %v635, %v635
    %v684 = vpack.c.b16 %v636, %v636
    %v685 = vpack.c.b16 %v637, %v637
    %v686 = vpack.c.b16 %v638, %v638
    %v687 = vpack.c.b16 %v639, %v639
    %v688 = vpack.c.b16 %v640, %v640
    %v689 = vpack.c.b16 %v641, %v641
    %v690 = vpack.c.b16 %v642, %v642
    %v691 = vpack.c.b16 %v643, %v643
    %v692 = vpack.c.b16 %v644, %v644
    %v693 = vpack.c.b16 %v645, %v645
    %v694 = vpack.c.b16 %v646, %v646
    %v695 = vpack.c.b16 %v647, %v647
    %v696 = vpack.c.b16 %v648, %v648
    %v697 = vpack.c.b16 %v649, %v649
    %v698 = vpack.c.b16 %v650, %v650
    %v699 = vpack.c.b16 %v651, %v651
    %v700 = vpack.c.b16 %v652, %v652
    %v701 = vpack.c.b16 %v653, %v653
    %v702 = vpack.c.b16 %v654, %v654
    %v703 = vpack.c.b16 %v655, %v655
    %v704 = vpack.c.b16 %v656, %v656
    %v705 = vpack.c.b16 %v657, %v657
    %v706 = vpack.c.b16 %v658, %v658
    %v707 = vpack.c.b16 %v659, %v659
    %v708 = vpack.c.b16 %v660, %v660
    %v709 = vpack.c.b16 %v661, %v661
    %v710 = vpack.c.b16 %v662, %v662
    %v711 = vpack.c.b16 %v663, %v663
    %v712 = vpack.c.b16 %v664, %v664
    %v713 = vpack.c.b16 %v665, %v665
    %v714 = vpack.c.b16 %v666, %v666
    %v715 = vpack.c.b16 %v667, %v667
    %v716 = vpack.c.b16 %v668, %v668
    %v717 = vpack.c.b16 %v669, %v669
    %v718 = vpack.c.b16 %v670, %v670
    %v719 = vpack.c.b16 %v671, %v671
    %v720 = vpack.c.b16 %v672, %v672
    %v721 = vpack.c.b16 %v673, %v673
    %v722 = vpack.c.b16 %v674, %v674
    %v723 = vpack.c.b16 %v675, %v675
    %772 = vst [vmem:[#allocation7] sm:$0xf] %v676
    %773 = vst [vmem:[#allocation7 + $0x4] sm:$0xf] %v677
    %774 = vst [vmem:[#allocation7 + $0x8] sm:$0xf] %v678
    %775 = vst [vmem:[#allocation7 + $0xc] sm:$0xf] %v679
    %776 = vst [vmem:[#allocation7 + $0x10] sm:$0xf] %v680
    %777 = vst [vmem:[#allocation7 + $0x14] sm:$0xf] %v681
    %778 = vst [vmem:[#allocation7 + $0x18] sm:$0xf] %v682
    %779 = vst [vmem:[#allocation7 + $0x1c] sm:$0xf] %v683
    %780 = vst [vmem:[#allocation7 + $0x20] sm:$0xf] %v684
    %781 = vst [vmem:[#allocation7 + $0x24] sm:$0xf] %v685
    %782 = vst [vmem:[#allocation7 + $0x28] sm:$0xf] %v686
    %783 = vst [vmem:[#allocation7 + $0x2c] sm:$0xf] %v687
    %784 = vst [vmem:[#allocation7 + $0x30] sm:$0xf] %v688
    %785 = vst [vmem:[#allocation7 + $0x34] sm:$0xf] %v689
    %786 = vst [vmem:[#allocation7 + $0x38] sm:$0xf] %v690
    %787 = vst [vmem:[#allocation7 + $0x3c] sm:$0xf] %v691
    %788 = vst [vmem:[#allocation7 + $0x40] sm:$0xf] %v692
    %789 = vst [vmem:[#allocation7 + $0x44] sm:$0xf] %v693
    %790 = vst [vmem:[#allocation7 + $0x48] sm:$0xf] %v694
    %791 = vst [vmem:[#allocation7 + $0x4c] sm:$0xf] %v695
    %792 = vst [vmem:[#allocation7 + $0x50] sm:$0xf] %v696
    %793 = vst [vmem:[#allocation7 + $0x54] sm:$0xf] %v697
    %794 = vst [vmem:[#allocation7 + $0x58] sm:$0xf] %v698
    %795 = vst [vmem:[#allocation7 + $0x5c] sm:$0xf] %v699
    %796 = vst [vmem:[#allocation7 + $0x60] sm:$0xf] %v700
    %797 = vst [vmem:[#allocation7 + $0x64] sm:$0xf] %v701
    %798 = vst [vmem:[#allocation7 + $0x68] sm:$0xf] %v702
    %799 = vst [vmem:[#allocation7 + $0x6c] sm:$0xf] %v703
    %800 = vst [vmem:[#allocation7 + $0x70] sm:$0xf] %v704
    %801 = vst [vmem:[#allocation7 + $0x74] sm:$0xf] %v705
    %802 = vst [vmem:[#allocation7 + $0x78] sm:$0xf] %v706
    %803 = vst [vmem:[#allocation7 + $0x7c] sm:$0xf] %v707
    %804 = vst [vmem:[#allocation7 + $0x80] sm:$0xf] %v708
    %805 = vst [vmem:[#allocation7 + $0x84] sm:$0xf] %v709
    %806 = vst [vmem:[#allocation7 + $0x88] sm:$0xf] %v710
    %807 = vst [vmem:[#allocation7 + $0x8c] sm:$0xf] %v711
    %808 = vst [vmem:[#allocation7 + $0x90] sm:$0xf] %v712
    %809 = vst [vmem:[#allocation7 + $0x94] sm:$0xf] %v713
    %810 = vst [vmem:[#allocation7 + $0x98] sm:$0xf] %v714
    %811 = vst [vmem:[#allocation7 + $0x9c] sm:$0xf] %v715
    %812 = vst [vmem:[#allocation7 + $0xa0] sm:$0xf] %v716
    %813 = vst [vmem:[#allocation7 + $0xa4] sm:$0xf] %v717
    %814 = vst [vmem:[#allocation7 + $0xa8] sm:$0xf] %v718
    %815 = vst [vmem:[#allocation7 + $0xac] sm:$0xf] %v719
    %816 = vst [vmem:[#allocation7 + $0xb0] sm:$0xf] %v720
    %817 = vst [vmem:[#allocation7 + $0xb4] sm:$0xf] %v721
    %818 = vst [vmem:[#allocation7 + $0xb8] sm:$0xf] %v722
    %819 = vst [vmem:[#allocation7 + $0xbc] sm:$0xf] %v723
    // Predicated region
    $region22: #{tpu_custom_call.1} parent=1 // pred_check
      _
    $region23: #{tpu_custom_call.1} parent=1 // pred_check_branch
      %821 = sbr.rel (0) target = $region25
    $region24: #{tpu_custom_call.1} parent=1 // pred_region
      %s823 = ssub.s32 3072, 3072
      %824 = vsyncadd [#allocation4], %s823
      %s825 = sshll.u32 [#allocation7], 4
      %s826 = int_to_ptr.vmem [resolvable:$true] %s825
      %831 = dma.vmem_to_hbm [thread:$0]  %s826, 3072, %s3, [#allocation4], 64, 64, 4
    $region25: #{tpu_custom_call.1} parent=1 // pred_fallthru
      _
    // Predicated region
    $region26: #{tpu_custom_call.1} parent=1 // pred_check
      _
    $region27: #{tpu_custom_call.1} parent=1 // pred_check_branch
      %833 = sbr.rel (0) target = $region29
    $region28: #{tpu_custom_call.1} parent=1 // pred_region
      %834 = dma.done [#allocation4], 3072
    $region29: #{tpu_custom_call.1} parent=1 // pred_fallthru
      _
    %835 = vsyncpa [#allocation3], 1
    %836 = vsyncpa [#allocation6], 1
    %837 = vsyncpa [#allocation4], 1

</llo_original>
